<compile_context>
chip_gen: v5e
topology: v5e:2x2
jax: 0.10.0
libtpu: 0.0.40
codegen_flags: <defaults>
</compile_context>

<pallas_src>
import jax
import jax.numpy as jnp
from jax.experimental import pallas as pl
from jax.experimental.pallas import tpu as pltpu

INPUT_SIZE = 2
HIDDEN_SIZE = 20
GATE_PITCH = 128  # each gate padded to its own 128-lane (one-vreg) chunk


def lstm_cell_kernel(m_ref, g_ref, h_ref, c_ref,
                     wih_m_ref, wih_g_ref, whh_ref, b_ref,
                     h_out_ref, c_out_ref):
    """One PyTorch nn.LSTMCell step with gate-pitch-128 packed weights.

    m_ref, g_ref : (N, 1)            momentum / gradient columns
    h_ref        : (N, H)            previous hidden state
    c_ref        : (N, 1)            previous cell state (scalar per row)
    wih_m_ref    : (1, 4*GP)         W_ih^T row 0 (momentum), gate-padded
    wih_g_ref    : (1, 4*GP)         W_ih^T row 1 (gradient), gate-padded
    whh_ref      : (H, 4*GP)         W_hh^T, gate-padded
    b_ref        : (1, 4*GP)         b_ih + b_hh, gate-padded
    h_out_ref    : (N, H)
    c_out_ref    : (N, 1)            column 0 of the new cell state
    """
    H = HIDDEN_SIZE
    GP = GATE_PITCH

    m = m_ref[...]        # (N, 1)
    grad = g_ref[...]     # (N, 1)
    h = h_ref[...]        # (N, H)
    c = c_ref[...]        # (N, 1)  -- broadcasts against gate chunks for free

    # K=2 input contraction on the VPU: two broadcast FMAs, no MXU pass.
    gates = m * wih_m_ref[...] + grad * wih_g_ref[...] + b_ref[...]   # (N, 4*GP)
    # Recurrent contraction: single MXU pass; gate-padded weights make the
    # result already aligned to 128-lane gate chunks.
    gates = gates + jnp.dot(h, whh_ref[...], preferred_element_type=jnp.float32)

    # Vreg-aligned gate slices (offsets 0, 128, 256, 384 -> no lane rotates).
    i_g = jax.nn.sigmoid(gates[:, 0 * GP:1 * GP])
    f_g = jax.nn.sigmoid(gates[:, 1 * GP:2 * GP])
    g_g = jnp.tanh(gates[:, 2 * GP:3 * GP])
    o_g = jax.nn.sigmoid(gates[:, 3 * GP:4 * GP])

    c_new = f_g * c + i_g * g_g          # (N, GP); padded lanes are harmless
    h_new = o_g * jnp.tanh(c_new)        # (N, GP)

    h_out_ref[...] = h_new[:, :H]        # crop from lane 0 -> masked store only
    c_out_ref[...] = c_new[:, :1]        # the module only keeps column 0


def make_params(key, input_size=INPUT_SIZE, hidden_size=HIDDEN_SIZE, gain=0.02):
    """Logical parameters matching the module's init_weights() (PyTorch layout)."""
    k1, k2 = jax.random.split(key)
    # xavier_uniform_(W, gain): bound = gain * sqrt(6 / (fan_in + fan_out))
    fan_ih = input_size + 4 * hidden_size
    fan_hh = hidden_size + 4 * hidden_size
    b_ih_bound = gain * jnp.sqrt(6.0 / fan_ih)
    b_hh_bound = gain * jnp.sqrt(6.0 / fan_hh)
    w_ih = jax.random.uniform(k1, (4 * hidden_size, input_size),
                              jnp.float32, -b_ih_bound, b_ih_bound)
    w_hh = jax.random.uniform(k2, (4 * hidden_size, hidden_size),
                              jnp.float32, -b_hh_bound, b_hh_bound)
    # biases are init'd uniform_(0, 0) == zeros
    b_ih = jnp.zeros((4 * hidden_size,), jnp.float32)
    b_hh = jnp.zeros((4 * hidden_size,), jnp.float32)
    return w_ih, w_hh, b_ih, b_hh


def pack_params(w_ih, w_hh, b_ih, b_hh, hidden_size=HIDDEN_SIZE):
    """One-time packing into the kernel's gate-pitch-128 layout.

    Hoists all transposes / padding out of the per-call wrapper.
    Returns (wih_m (1,4GP), wih_g (1,4GP), whh (H,4GP), bias (1,4GP)).
    """
    H, GP = hidden_size, GATE_PITCH

    def pad_gates(w_t):  # (rows, 4H) -> (rows, 4*GP), gate g at lane offset g*GP
        return jnp.concatenate(
            [jnp.pad(w_t[:, g * H:(g + 1) * H], ((0, 0), (0, GP - H)))
             for g in range(4)], axis=1)

    wih_t = pad_gates(jnp.transpose(w_ih))            # (input_size, 4*GP)
    whh_t = pad_gates(jnp.transpose(w_hh))            # (H, 4*GP)
    bias = pad_gates((b_ih + b_hh)[None, :])          # (1, 4*GP)
    return (wih_t[0:1, :], wih_t[1:2, :], whh_t, bias)


def learning_rate_learner_lstm(momentum, gradient, h_t, c_t, packed):
    """Forward pass of LearningRateLearner_LSTM.

    momentum, gradient : (N,) float32
    h_t                : (N, hidden) float32
    c_t                : (N,) float32
    packed             : output of pack_params (done once per parameter set)
    returns (h_new (N, hidden), c_new (N,))
    """
    wih_m, wih_g, whh, bias = packed
    N, H = h_t.shape

    m2 = momentum.reshape(N, 1)
    g2 = gradient.reshape(N, 1)
    c2 = c_t.reshape(N, 1)

    vmem = pl.BlockSpec(memory_space=pltpu.MemorySpace.VMEM)
    h_new, c_new = pl.pallas_call(
        lstm_cell_kernel,
        out_shape=(
            jax.ShapeDtypeStruct((N, H), jnp.float32),
            jax.ShapeDtypeStruct((N, 1), jnp.float32),
        ),
        in_specs=[vmem] * 8,
        out_specs=(vmem, vmem),
    )(m2, g2, h_t, c2, wih_m, wih_g, whh, bias)

    return h_new, c_new[:, 0]


def reference_forward(momentum, gradient, h_t, c_t, w_ih, w_hh, b_ih, b_hh):
    """Pure-JAX reference of the PyTorch forward (for verification)."""
    N, H = h_t.shape
    x = jnp.stack([momentum, gradient], axis=1)                    # (N, 2)
    c_exp = jnp.broadcast_to(c_t[:, None], (N, H))                 # (N, H)
    gates = x @ w_ih.T + h_t @ w_hh.T + (b_ih + b_hh)
    i_g = jax.nn.sigmoid(gates[:, 0 * H:1 * H])
    f_g = jax.nn.sigmoid(gates[:, 1 * H:2 * H])
    g_g = jnp.tanh(gates[:, 2 * H:3 * H])
    o_g = jax.nn.sigmoid(gates[:, 3 * H:4 * H])
    c_new = f_g * c_exp + i_g * g_g
    h_new = o_g * jnp.tanh(c_new)
    return h_new, c_new[:, 0]


if __name__ == "__main__":
    key = jax.random.PRNGKey(0)
    kp, k1, k2, k3, k4 = jax.random.split(key, 5)

    N = 8  # number of parameters being meta-learned (batch)
    w_ih, w_hh, b_ih, b_hh = make_params(kp)
    packed = pack_params(w_ih, w_hh, b_ih, b_hh)   # one-time weight packing

    momentum = jax.random.normal(k1, (N,), jnp.float32)
    gradient = jax.random.normal(k2, (N,), jnp.float32)
    h_t = jax.random.normal(k3, (N, HIDDEN_SIZE), jnp.float32)
    c_t = jax.random.normal(k4, (N,), jnp.float32)

    h_new, c_new = learning_rate_learner_lstm(momentum, gradient, h_t, c_t, packed)
    jax.block_until_ready((h_new, c_new))

    h_ref, c_ref = reference_forward(momentum, gradient, h_t, c_t,
                                     w_ih, w_hh, b_ih, b_hh)
    assert h_new.shape == (N, HIDDEN_SIZE) and c_new.shape == (N,)
    assert jnp.allclose(h_new, h_ref, atol=1e-5, rtol=1e-5)
    assert jnp.allclose(c_new, c_ref, atol=1e-5, rtol=1e-5)

    print("KERNEL_OK")
</pallas_src>

<mosaic_0001>
module attributes {stable_mosaic.version = 11 : i64} {
  func.func @lstm_cell_kernel(%arg0: memref<8x1xf32, #tpu.memory_space<vmem>>, %arg1: memref<8x1xf32, #tpu.memory_space<vmem>>, %arg2: memref<8x20xf32, #tpu.memory_space<vmem>>, %arg3: memref<8x1xf32, #tpu.memory_space<vmem>>, %arg4: memref<1x512xf32, #tpu.memory_space<vmem>>, %arg5: memref<1x512xf32, #tpu.memory_space<vmem>>, %arg6: memref<20x512xf32, #tpu.memory_space<vmem>>, %arg7: memref<1x512xf32, #tpu.memory_space<vmem>>, %arg8: memref<8x20xf32, #tpu.memory_space<vmem>>, %arg9: memref<8x1xf32, #tpu.memory_space<vmem>>) attributes {dimension_semantics = [], scalar_prefetch = 0 : i64, scratch_operands = 0 : i64, tpu.core_type = #tpu.core_type<tc>} {
    %c0 = arith.constant 0 : index
    %c0_0 = arith.constant 0 : index
    %0 = vector.load %arg0[%c0, %c0_0] : memref<8x1xf32, #tpu.memory_space<vmem>>, vector<8x1xf32>
    %c0_1 = arith.constant 0 : index
    %c0_2 = arith.constant 0 : index
    %1 = vector.load %arg1[%c0_1, %c0_2] : memref<8x1xf32, #tpu.memory_space<vmem>>, vector<8x1xf32>
    %c0_3 = arith.constant 0 : index
    %c0_4 = arith.constant 0 : index
    %2 = vector.load %arg2[%c0_3, %c0_4] : memref<8x20xf32, #tpu.memory_space<vmem>>, vector<8x20xf32>
    %c0_5 = arith.constant 0 : index
    %c0_6 = arith.constant 0 : index
    %3 = vector.load %arg3[%c0_5, %c0_6] : memref<8x1xf32, #tpu.memory_space<vmem>>, vector<8x1xf32>
    %c0_7 = arith.constant 0 : index
    %c0_8 = arith.constant 0 : index
    %4 = vector.load %arg4[%c0_7, %c0_8] : memref<1x512xf32, #tpu.memory_space<vmem>>, vector<1x512xf32>
    %5 = vector.broadcast %0 : vector<8x1xf32> to vector<8x512xf32>
    %6 = vector.broadcast %4 : vector<1x512xf32> to vector<8x512xf32>
    %7 = arith.mulf %5, %6 : vector<8x512xf32>
    %c0_9 = arith.constant 0 : index
    %c0_10 = arith.constant 0 : index
    %8 = vector.load %arg5[%c0_9, %c0_10] : memref<1x512xf32, #tpu.memory_space<vmem>>, vector<1x512xf32>
    %9 = vector.broadcast %1 : vector<8x1xf32> to vector<8x512xf32>
    %10 = vector.broadcast %8 : vector<1x512xf32> to vector<8x512xf32>
    %11 = arith.mulf %9, %10 : vector<8x512xf32>
    %12 = arith.addf %7, %11 : vector<8x512xf32>
    %c0_11 = arith.constant 0 : index
    %c0_12 = arith.constant 0 : index
    %13 = vector.load %arg7[%c0_11, %c0_12] : memref<1x512xf32, #tpu.memory_space<vmem>>, vector<1x512xf32>
    %14 = vector.broadcast %13 : vector<1x512xf32> to vector<8x512xf32>
    %15 = arith.addf %12, %14 : vector<8x512xf32>
    %c0_13 = arith.constant 0 : index
    %c0_14 = arith.constant 0 : index
    %16 = vector.load %arg6[%c0_13, %c0_14] : memref<20x512xf32, #tpu.memory_space<vmem>>, vector<20x512xf32>
    %cst = arith.constant dense<0.000000e+00> : vector<8x512xf32>
    %17 = tpu.matmul %2, %16, %cst {dimension_numbers = #tpu.dot_dimension_numbers<[1], [0], [0], [1], [0, 0, 1, 1], [], []>} : vector<8x20xf32>, vector<20x512xf32>, vector<8x512xf32> -> vector<8x512xf32>
    %18 = arith.addf %15, %17 : vector<8x512xf32>
    %19 = vector.extract_strided_slice %18 {offsets = [0, 0], sizes = [8, 128], strides = [1, 1]} : vector<8x512xf32> to vector<8x128xf32>
    %20 = arith.negf %19 : vector<8x128xf32>
    %21 = math.exp %20 : vector<8x128xf32>
    %cst_15 = arith.constant 1.000000e+00 : f32
    %22 = vector.broadcast %cst_15 : f32 to vector<8x128xf32>
    %23 = arith.addf %22, %21 : vector<8x128xf32>
    %24 = arith.divf %22, %23 : vector<8x128xf32>
    %25 = vector.extract_strided_slice %18 {offsets = [0, 128], sizes = [8, 128], strides = [1, 1]} : vector<8x512xf32> to vector<8x128xf32>
    %26 = arith.negf %25 : vector<8x128xf32>
    %27 = math.exp %26 : vector<8x128xf32>
    %cst_16 = arith.constant 1.000000e+00 : f32
    %28 = vector.broadcast %cst_16 : f32 to vector<8x128xf32>
    %29 = arith.addf %28, %27 : vector<8x128xf32>
    %30 = arith.divf %28, %29 : vector<8x128xf32>
    %31 = vector.extract_strided_slice %18 {offsets = [0, 256], sizes = [8, 128], strides = [1, 1]} : vector<8x512xf32> to vector<8x128xf32>
    %32 = math.tanh %31 : vector<8x128xf32>
    %33 = vector.extract_strided_slice %18 {offsets = [0, 384], sizes = [8, 128], strides = [1, 1]} : vector<8x512xf32> to vector<8x128xf32>
    %34 = arith.negf %33 : vector<8x128xf32>
    %35 = math.exp %34 : vector<8x128xf32>
    %cst_17 = arith.constant 1.000000e+00 : f32
    %36 = vector.broadcast %cst_17 : f32 to vector<8x128xf32>
    %37 = arith.addf %36, %35 : vector<8x128xf32>
    %38 = arith.divf %36, %37 : vector<8x128xf32>
    %39 = vector.broadcast %3 : vector<8x1xf32> to vector<8x128xf32>
    %40 = arith.mulf %30, %39 : vector<8x128xf32>
    %41 = arith.mulf %24, %32 : vector<8x128xf32>
    %42 = arith.addf %40, %41 : vector<8x128xf32>
    %43 = math.tanh %42 : vector<8x128xf32>
    %44 = arith.mulf %38, %43 : vector<8x128xf32>
    %45 = vector.extract_strided_slice %44 {offsets = [0, 0], sizes = [8, 20], strides = [1, 1]} : vector<8x128xf32> to vector<8x20xf32>
    %c0_18 = arith.constant 0 : index
    %c0_19 = arith.constant 0 : index
    %46 = vector.load %arg8[%c0_18, %c0_19] : memref<8x20xf32, #tpu.memory_space<vmem>>, vector<8x20xf32>
    tpu.vector_store %arg8[%c0_18, %c0_19], %45 {strides = array<i32>} : memref<8x20xf32, #tpu.memory_space<vmem>>, vector<8x20xf32>,
    %47 = vector.extract_strided_slice %42 {offsets = [0, 0], sizes = [8, 1], strides = [1, 1]} : vector<8x128xf32> to vector<8x1xf32>
    %c0_20 = arith.constant 0 : index
    %c0_21 = arith.constant 0 : index
    %48 = vector.load %arg9[%c0_20, %c0_21] : memref<8x1xf32, #tpu.memory_space<vmem>>, vector<8x1xf32>
    tpu.vector_store %arg9[%c0_20, %c0_21], %47 {strides = array<i32>} : memref<8x1xf32, #tpu.memory_space<vmem>>, vector<8x1xf32>,
    return
  }
}

</mosaic_0001>

<llo_original>
// kernel: tpu_custom_call.1
$region0: #{tpu_custom_call.1}
  #allocation0 [shape = 'u32[]', space=smem, size = 0x4, offset = 0x4, fixed_abs, tag = 'smem constant byte address 0x4 - core index']
  #allocation1 [shape = 'u32[72,128]{1,0:T(1,128)}', space=vmem, size = 0x9000, scoped, tag = 'internal scratch']
  %s0 = inlined_call_operand.vmem [shape: f32[8,1], index: 0, kind: input, shape index: {}]
  %s1 = inlined_call_operand.vmem [shape: f32[8,1], index: 1, kind: input, shape index: {}]
  %s2 = inlined_call_operand.vmem [shape: f32[8,20], index: 2, kind: input, shape index: {}]
  %s3 = inlined_call_operand.vmem [shape: f32[8,1], index: 3, kind: input, shape index: {}]
  %s4 = inlined_call_operand.vmem [shape: f32[1,512], index: 4, kind: input, shape index: {}]
  %s5 = inlined_call_operand.vmem [shape: f32[1,512], index: 5, kind: input, shape index: {}]
  %s6 = inlined_call_operand.hbm [shape: f32[20,512], index: 6, kind: input, shape index: {}]
  %s7 = inlined_call_operand.vmem [shape: f32[1,512], index: 7, kind: input, shape index: {}]
  %s8 = inlined_call_operand.hbm [shape: f32[8,20], index: 8, kind: output, shape index: {0}]
  %s9 = inlined_call_operand.vmem [shape: f32[8,1], index: 9, kind: output, shape index: {1}]
  %10 = xla_tuple %s8, %s9
  %s11 = sld [smem:[#allocation0]]
  $region54: #{tpu_custom_call.1} parent=0
    _
  %s13 = ssub.s32 1, %s11
  %s14 = scalar_select 0, %s13, %s11
  $region1: #{tpu_custom_call.1} parent=0
    #allocation2 [shape = 'u8[49152]{0}', space=vmem, size = 0xc000, scoped, tag = 'input window, operand 6, single buffered']
    #allocation3 [shape = 's32[1]{0}', space=sflag, size = 0x4, scoped, tag = 'scoped memory for tpu_custom_call.1']
    #allocation4 [shape = 's32[1]{0}', space=sflag, size = 0x4, scoped, tag = 'scoped memory for tpu_custom_call.1']
    #allocation5 [shape = 'u8[4096]{0}', space=vmem, size = 0x1000, scoped, tag = 'output window, operand 0, single buffered']
    %15 = vsyncpa [#allocation3], 0
    %16 = vsyncpa [#allocation4], 0
    // Predicated region
    $region2: #{tpu_custom_call.1} parent=1 // pred_check
      _
    $region3: #{tpu_custom_call.1} parent=1 // pred_check_branch
      %18 = sbr.rel (0) target = $region5
    $region4: #{tpu_custom_call.1} parent=1 // pred_region
      _
    $region5: #{tpu_custom_call.1} parent=1 // pred_fallthru
      _
    // Predicated region
    $region6: #{tpu_custom_call.1} parent=1 // pred_check
      _
    $region7: #{tpu_custom_call.1} parent=1 // pred_check_branch
      %20 = sbr.rel (0) target = $region9
    $region8: #{tpu_custom_call.1} parent=1 // pred_region
      _
    $region9: #{tpu_custom_call.1} parent=1 // pred_fallthru
      _
    // Predicated region
    $region10: #{tpu_custom_call.1} parent=1 // pred_check
      _
    $region11: #{tpu_custom_call.1} parent=1 // pred_check_branch
      %22 = sbr.rel (0) target = $region13
    $region12: #{tpu_custom_call.1} parent=1 // pred_region
      _
    $region13: #{tpu_custom_call.1} parent=1 // pred_fallthru
      _
    // Predicated region
    $region14: #{tpu_custom_call.1} parent=1 // pred_check
      _
    $region15: #{tpu_custom_call.1} parent=1 // pred_check_branch
      %24 = sbr.rel (0) target = $region17
    $region16: #{tpu_custom_call.1} parent=1 // pred_region
      _
    $region17: #{tpu_custom_call.1} parent=1 // pred_fallthru
      _
    // Predicated region
    $region18: #{tpu_custom_call.1} parent=1 // pred_check
      _
    $region19: #{tpu_custom_call.1} parent=1 // pred_check_branch
      %26 = sbr.rel (0) target = $region21
    $region20: #{tpu_custom_call.1} parent=1 // pred_region
      _
    $region21: #{tpu_custom_call.1} parent=1 // pred_fallthru
      _
    // Predicated region
    $region22: #{tpu_custom_call.1} parent=1 // pred_check
      _
    $region23: #{tpu_custom_call.1} parent=1 // pred_check_branch
      %28 = sbr.rel (0) target = $region25
    $region24: #{tpu_custom_call.1} parent=1 // pred_region
      _
    $region25: #{tpu_custom_call.1} parent=1 // pred_fallthru
      _
    // Predicated region
    $region26: #{tpu_custom_call.1} parent=1 // pred_check
      _
    $region27: #{tpu_custom_call.1} parent=1 // pred_check_branch
      %30 = sbr.rel (0) target = $region29
    $region28: #{tpu_custom_call.1} parent=1 // pred_region
      %32 = vsyncadd [#allocation3], 0
      %s33 = sshll.u32 %s6, 4
      %s34 = int_to_ptr.hbm [resolvable:$true] %s33
      %s35 = sshll.u32 [#allocation2], 4
      %s36 = int_to_ptr.vmem [resolvable:$true] %s35
      %41 = dma.hbm_to_vmem [thread:$0]  %s34, 1536, %s36, [#allocation3], 512, 512, 32
    $region29: #{tpu_custom_call.1} parent=1 // pred_fallthru
      _
    // Predicated region
    $region30: #{tpu_custom_call.1} parent=1 // pred_check
      _
    $region31: #{tpu_custom_call.1} parent=1 // pred_check_branch
      %43 = sbr.rel (0) target = $region33
    $region32: #{tpu_custom_call.1} parent=1 // pred_region
      _
    $region33: #{tpu_custom_call.1} parent=1 // pred_fallthru
      _
    // Predicated region
    $region34: #{tpu_custom_call.1} parent=1 // pred_check
      _
    $region35: #{tpu_custom_call.1} parent=1 // pred_check_branch
      %45 = sbr.rel (0) target = $region37
    $region36: #{tpu_custom_call.1} parent=1 // pred_region
      %47 = dma.done [#allocation3], 1536
    $region37: #{tpu_custom_call.1} parent=1 // pred_fallthru
      _
    %v48 = vld [vmem:[%s0] sm:$0xff]
    %v49 = vld [vmem:[%s1] sm:$0xff]
    %v50 = vld [vmem:[%s2] sm:$0xff]
    %v51 = vld [vmem:[%s3] sm:$0xff]
    %v52 = vld [vmem:[%s4] sm:$0xf]
    %54 = vset.pattern.permute.xlu0 0
    %55 = vperm.xlu0 %54, %v48
    %v56 = vpop.permute.xlu0 %55
    %v59 = vperm.slane %v52, 0
    %v60 = vperm.slane %v52, 1
    %v61 = vperm.slane %v52, 2
    %v62 = vperm.slane %v52, 3
    %v67 = vmul.f32 %v56, %v59
    %v68 = vmul.f32 %v56, %v60
    %v69 = vmul.f32 %v56, %v61
    %v70 = vmul.f32 %v56, %v62
    %v71 = vld [vmem:[%s5] sm:$0xf]
    %73 = vset.pattern.permute.xlu0 0
    %74 = vperm.xlu0 %73, %v49
    %v75 = vpop.permute.xlu0 %74
    %v78 = vperm.slane %v71, 0
    %v79 = vperm.slane %v71, 1
    %v80 = vperm.slane %v71, 2
    %v81 = vperm.slane %v71, 3
    %v86 = vmul.f32 %v75, %v78
    %v87 = vmul.f32 %v75, %v79
    %v88 = vmul.f32 %v75, %v80
    %v89 = vmul.f32 %v75, %v81
    %v90 = vadd.f32 %v67, %v86
    %v91 = vadd.f32 %v68, %v87
    %v92 = vadd.f32 %v69, %v88
    %v93 = vadd.f32 %v70, %v89
    %v94 = vld [vmem:[%s7] sm:$0xf]
    %v96 = vperm.slane %v94, 0
    %v97 = vperm.slane %v94, 1
    %v98 = vperm.slane %v94, 2
    %v99 = vperm.slane %v94, 3
    %v104 = vadd.f32 %v90, %v96
    %v105 = vadd.f32 %v91, %v97
    %v106 = vadd.f32 %v92, %v98
    %v107 = vadd.f32 %v93, %v99
    %v108 = vld [vmem:[#allocation2] sm:$0xff]
    %v109 = vld [vmem:[#allocation2 + $0x8] sm:$0xff]
    %v110 = vld [vmem:[#allocation2 + $0x10] sm:$0xff]
    %v111 = vld [vmem:[#allocation2 + $0x18] sm:$0xff]
    %v112 = vld [vmem:[#allocation2 + $0x20] sm:$0xff]
    %v113 = vld [vmem:[#allocation2 + $0x28] sm:$0xff]
    %v114 = vld [vmem:[#allocation2 + $0x30] sm:$0xff]
    %v115 = vld [vmem:[#allocation2 + $0x38] sm:$0xff]
    %v116 = vld [vmem:[#allocation2 + $0x40] sm:$0xf]
    %v117 = vld [vmem:[#allocation2 + $0x48] sm:$0xf]
    %v118 = vld [vmem:[#allocation2 + $0x50] sm:$0xf]
    %v119 = vld [vmem:[#allocation2 + $0x58] sm:$0xf]
    %vm120 = vcmask 162816
    %v122 = vsel %vm120, %v50, 0
    %vm124 = vcmask 1043456
    %v126 = vsel %vm124, %v116, 0
    %v129 = vsel %vm124, %v117, 0
    %v132 = vsel %vm124, %v118, 0
    %v135 = vsel %vm124, %v119, 0
    %137 = vmatpush.msra.mxu0 0.0
    %138 = vmatpush.msra.mxu0 0.0
    %139 = vmatpush.msra.mxu0 0.0
    %140 = vmatpush.msra.mxu0 0.0
    %141 = vmatpush.msra.mxu0 0.0
    %142 = vmatpush.msra.mxu0 0.0
    %143 = vmatpush.msra.mxu0 0.0
    %144 = vmatpush.msra.mxu0 0.0
    %145 = vmatpush.msra.mxu0 0.0
    %146 = vmatpush.msra.mxu0 0.0
    %147 = vmatpush.msra.mxu0 0.0
    %148 = vmatpush.msra.mxu0 0.0
    %149 = vmatpush.msra.mxu0 0.0
    %150 = vmatpush.msra.mxu0 %v126
    %151 = vmatpush.msra.mxu0 %v112
    %152 = vmatpush.msra.mxu0 %v108
    %153 = vmatmul.f32.gmra.mxu0 %v122
    %v154 = vpop.f32.mrf.mxu0
    %v155 = vadd.f32 0.0, %v154
    %156 = vdwg.mxu0
    %157 = vmatpush.msra.mxu0 0.0
    %158 = vmatpush.msra.mxu0 0.0
    %159 = vmatpush.msra.mxu0 0.0
    %160 = vmatpush.msra.mxu0 0.0
    %161 = vmatpush.msra.mxu0 0.0
    %162 = vmatpush.msra.mxu0 0.0
    %163 = vmatpush.msra.mxu0 0.0
    %164 = vmatpush.msra.mxu0 0.0
    %165 = vmatpush.msra.mxu0 0.0
    %166 = vmatpush.msra.mxu0 0.0
    %167 = vmatpush.msra.mxu0 0.0
    %168 = vmatpush.msra.mxu0 0.0
    %169 = vmatpush.msra.mxu0 0.0
    %170 = vmatpush.msra.mxu0 %v129
    %171 = vmatpush.msra.mxu0 %v113
    %172 = vmatpush.msra.mxu0 %v109
    %173 = vmatmul.f32.gmra.mxu0 %v122
    %v174 = vpop.f32.mrf.mxu0
    %v175 = vadd.f32 0.0, %v174
    %176 = vdwg.mxu0
    %177 = vmatpush.msra.mxu0 0.0
    %178 = vmatpush.msra.mxu0 0.0
    %179 = vmatpush.msra.mxu0 0.0
    %180 = vmatpush.msra.mxu0 0.0
    %181 = vmatpush.msra.mxu0 0.0
    %182 = vmatpush.msra.mxu0 0.0
    %183 = vmatpush.msra.mxu0 0.0
    %184 = vmatpush.msra.mxu0 0.0
    %185 = vmatpush.msra.mxu0 0.0
    %186 = vmatpush.msra.mxu0 0.0
    %187 = vmatpush.msra.mxu0 0.0
    %188 = vmatpush.msra.mxu0 0.0
    %189 = vmatpush.msra.mxu0 0.0
    %190 = vmatpush.msra.mxu0 %v132
    %191 = vmatpush.msra.mxu0 %v114
    %192 = vmatpush.msra.mxu0 %v110
    %193 = vmatmul.f32.gmra.mxu0 %v122
    %v194 = vpop.f32.mrf.mxu0
    %v195 = vadd.f32 0.0, %v194
    %196 = vdwg.mxu0
    %197 = vmatpush.msra.mxu0 0.0
    %198 = vmatpush.msra.mxu0 0.0
    %199 = vmatpush.msra.mxu0 0.0
    %200 = vmatpush.msra.mxu0 0.0
    %201 = vmatpush.msra.mxu0 0.0
    %202 = vmatpush.msra.mxu0 0.0
    %203 = vmatpush.msra.mxu0 0.0
    %204 = vmatpush.msra.mxu0 0.0
    %205 = vmatpush.msra.mxu0 0.0
    %206 = vmatpush.msra.mxu0 0.0
    %207 = vmatpush.msra.mxu0 0.0
    %208 = vmatpush.msra.mxu0 0.0
    %209 = vmatpush.msra.mxu0 0.0
    %210 = vmatpush.msra.mxu0 %v135
    %211 = vmatpush.msra.mxu0 %v115
    %212 = vmatpush.msra.mxu0 %v111
    %213 = vmatmul.f32.gmra.mxu0 %v122
    %v214 = vpop.f32.mrf.mxu0
    %v215 = vadd.f32 0.0, %v214
    %216 = vdwg.mxu0
    %v217 = vadd.f32 %v104, %v155
    %v218 = vadd.f32 %v105, %v175
    %v219 = vadd.f32 %v106, %v195
    %v220 = vadd.f32 %v107, %v215
    %v221 = vxor.u32 %v217, 2147483648
    %v222 = vmul.f32 %v221, 1.442695
    %v223 = vpow.pop %v222
    %v224 = vadd.f32 %v223, 1.0
    %v225 = vrcp.pop %v224
    %v226 = vmul.f32 %v224, %v225
    %v227 = vsub.f32 1.0, %v226
    %v228 = vmul.f32 %v225, %v227
    %v229 = vadd.f32 %v225, %v228
    %vm230 = vweird.f32 %v224
    %vm231 = vweird.f32 %v225
    %vm232 = vmor %vm230, %vm231
    %v233 = vsel %vm232, %v225, %v229
    %v234 = vand.u32 2147483647, %v224
    %vm235 = vcmp.eq.f32.partialorder %v234, 8.507059e+37
    %v236 = vand.u32 %v224, 2147483648
    %v237 = vor.u32 1.1754944e-38, %v236
    %v238 = vsel %vm235, %v237, %v233
    %v239 = vmul.f32 1.0, %v238
    %v240 = vxor.u32 %v218, 2147483648
    %v241 = vmul.f32 %v240, 1.442695
    %v242 = vpow.pop %v241
    %v243 = vadd.f32 %v242, 1.0
    %v244 = vrcp.pop %v243
    %v245 = vmul.f32 %v243, %v244
    %v246 = vsub.f32 1.0, %v245
    %v247 = vmul.f32 %v244, %v246
    %v248 = vadd.f32 %v244, %v247
    %vm249 = vweird.f32 %v243
    %vm250 = vweird.f32 %v244
    %vm251 = vmor %vm249, %vm250
    %v252 = vsel %vm251, %v244, %v248
    %v253 = vand.u32 2147483647, %v243
    %vm254 = vcmp.eq.f32.partialorder %v253, 8.507059e+37
    %v255 = vand.u32 %v243, 2147483648
    %v256 = vor.u32 1.1754944e-38, %v255
    %v257 = vsel %vm254, %v256, %v252
    %v258 = vmul.f32 1.0, %v257
    %v259 = vtanh.pop %v219
    %v260 = vxor.u32 %v220, 2147483648
    %v261 = vmul.f32 %v260, 1.442695
    %v262 = vpow.pop %v261
    %v263 = vadd.f32 %v262, 1.0
    %v264 = vrcp.pop %v263
    %v265 = vmul.f32 %v263, %v264
    %v266 = vsub.f32 1.0, %v265
    %v267 = vmul.f32 %v264, %v266
    %v268 = vadd.f32 %v264, %v267
    %vm269 = vweird.f32 %v263
    %vm270 = vweird.f32 %v264
    %vm271 = vmor %vm269, %vm270
    %v272 = vsel %vm271, %v264, %v268
    %v273 = vand.u32 2147483647, %v263
    %vm274 = vcmp.eq.f32.partialorder %v273, 8.507059e+37
    %v275 = vand.u32 %v263, 2147483648
    %v276 = vor.u32 1.1754944e-38, %v275
    %v277 = vsel %vm274, %v276, %v272
    %v278 = vmul.f32 1.0, %v277
    %280 = vset.pattern.permute.xlu0 0
    %281 = vperm.xlu0 %280, %v51
    %v282 = vpop.permute.xlu0 %281
    %v284 = vmul.f32 %v258, %v282
    %v285 = vmul.f32 %v239, %v259
    %v286 = vadd.f32 %v284, %v285
    %v287 = vtanh.pop %v286
    %v288 = vmul.f32 %v278, %v287
    %289 = vst.msk [vmem:[#allocation5] sm:$0xff] %vm120, %v288
    %vm290 = vcmask 7168
    %291 = vst.msk [vmem:[%s9] sm:$0xff] %vm290, %v286
    // Predicated region
    $region38: #{tpu_custom_call.1} parent=1 // pred_check
      _
    $region39: #{tpu_custom_call.1} parent=1 // pred_check_branch
      %293 = sbr.rel (0) target = $region41
    $region40: #{tpu_custom_call.1} parent=1 // pred_region
      %295 = vsyncadd [#allocation4], 0
      %s297 = sshll.u32 [#allocation5], 4
      %s298 = int_to_ptr.vmem [resolvable:$true] %s297
      %s299 = sshll.u32 %s8, 4
      %s300 = int_to_ptr.hbm [resolvable:$true] %s299
      %302 = dma.vmem_to_hbm [thread:$0]  %s298, 128, %s300, [#allocation4]
    $region41: #{tpu_custom_call.1} parent=1 // pred_fallthru
      _
    // Predicated region
    $region42: #{tpu_custom_call.1} parent=1 // pred_check
      _
    $region43: #{tpu_custom_call.1} parent=1 // pred_check_branch
      %304 = sbr.rel (0) target = $region45
    $region44: #{tpu_custom_call.1} parent=1 // pred_region
      _
    $region45: #{tpu_custom_call.1} parent=1 // pred_fallthru
      _
    // Predicated region
    $region46: #{tpu_custom_call.1} parent=1 // pred_check
      _
    $region47: #{tpu_custom_call.1} parent=1 // pred_check_branch
      %306 = sbr.rel (0) target = $region49
    $region48: #{tpu_custom_call.1} parent=1 // pred_region
      %308 = dma.done [#allocation4], 128
    $region49: #{tpu_custom_call.1} parent=1 // pred_fallthru
      _
    // Predicated region
    $region50: #{tpu_custom_call.1} parent=1 // pred_check
      _
    $region51: #{tpu_custom_call.1} parent=1 // pred_check_branch
      %310 = sbr.rel (0) target = $region53
    $region52: #{tpu_custom_call.1} parent=1 // pred_region
      _
    $region53: #{tpu_custom_call.1} parent=1 // pred_fallthru
      _
    %311 = vsyncpa [#allocation3], 1
    %312 = vsyncpa [#allocation4], 1

</llo_original>
